<compile_context>
chip_gen: v7x
topology: tpu7x:2x2x1
jax: 0.10.0
libtpu: 0.0.40
codegen_flags: <defaults>
</compile_context>

<pallas_src>
import jax
import jax.numpy as jnp
import numpy as np
from jax.experimental import pallas as pl
from jax.experimental.pallas import tpu as pltpu

FEATURE_NUM = 66        # self.featureNum
C1 = C2 = C3 = 16       # outChannels1/2/3
FC_IN = 80              # self.prdFC_inputSize
FC_H1 = 64              # self.prdFC_linearSize1
FC_H2 = 64              # self.prdFC_linearSize2
GROUP = FC_IN // C3     # 5 pooled positions per FC row
BN_EPS = 1e-5


# ------------------------------ fused kernel -------------------------------- #

def _fused_kernel(x_ref,
                  w1e_ref, w1o_ref, t1_ref, w2_ref, t2_ref, w3_ref, t3_ref,
                  f1_ref, u1_ref, f2_ref, u2_ref, f3_ref, u3_ref,
                  o_ref):
    """conv1+BN+ReLU -> maxpool(2) -> conv2+BN+ReLU -> conv3+BN+ReLU -> FC stack."""

    def layer(h, w_ref, b_ref, relu=True):
        z = jnp.dot(h, w_ref[...], preferred_element_type=jnp.float32) + b_ref[...]
        return jnp.maximum(z, 0.0) if relu else z

    x = x_ref[...]                                          # (rows, 660) interleaved raw positions
    he = jnp.dot(x, w1e_ref[...], preferred_element_type=jnp.float32)   # even positions
    ho = jnp.dot(x, w1o_ref[...], preferred_element_type=jnp.float32)   # odd positions
    # MaxPool1d(2) after BN+ReLU; shared BN shift added once (exact: +t is monotonic).
    pooled = jnp.maximum(jnp.maximum(he, ho) + t1_ref[...], 0.0)

    h2 = layer(pooled, w2_ref, t2_ref)
    h3 = layer(h2, w3_ref, t3_ref)                          # == the (rows, 80) FC input
    # TODO(synk): Dropout(p=0.5) is identity in eval mode; train-mode masking not implemented.
    a1 = layer(h3, f1_ref, u1_ref)
    a2 = layer(a1, f2_ref, u2_ref)
    o_ref[...] = layer(a2, f3_ref, u3_ref, relu=False)      # lane-dense (padded) output


# --------------------------------- wrapper ----------------------------------- #

def _round_up(x, m):
    return (x + m - 1) // m * m


def cnn_basic_forward(x, kernel_params, num_output, *, block_rows=512):
    """x: (B, L, 66) float32, same logical input as the PyTorch module."""
    B, L, C = x.shape
    assert C == FEATURE_NUM
    Lp = L // 2                       # MaxPool1d(2) output length (drops odd tail)
    n_pos = B * Lp
    assert (n_pos * C3) % FC_IN == 0, "torch reshape(-1, 80) requires divisibility"
    R = n_pos * C3 // FC_IN           # FC rows

    # Pure-reshape input layout: each FC row <- 2*GROUP=10 consecutive raw
    # positions of 66 channels (no even/odd split copy; parity handled by the
    # interleaved-expanded conv1 weights).
    xall = x[:, :2 * Lp, :].reshape(R, 2 * GROUP * C)

    # Pad the final-layer weight/bias to a lane-dense (multiple-of-128) width.
    params = list(kernel_params)
    f3, u3 = params[-2], params[-1]
    out_pad = _round_up(max(num_output, 1), 128)
    if f3.shape[-1] != out_pad:
        f3 = jnp.pad(f3, ((0, 0), (0, out_pad - f3.shape[-1])))
        u3 = jnp.pad(u3, ((0, 0), (0, out_pad - u3.shape[-1])))
    params[-2], params[-1] = f3, u3

    # Row tiling: pad rows to a multiple of the block so every block is full.
    br = min(block_rows, _round_up(R, 8))
    Rp = _round_up(R, br)
    if Rp != R:
        xall = jnp.pad(xall, ((0, Rp - R), (0, 0)))
    grid = (Rp // br,)

    def resident_spec(shape):
        return pl.BlockSpec(shape, lambda i, _nd=len(shape): (0,) * _nd)

    in_specs = [pl.BlockSpec((br, 2 * GROUP * C), lambda i: (i, 0))]
    in_specs += [resident_spec(p.shape) for p in params]

    out = pl.pallas_call(
        _fused_kernel,
        out_shape=jax.ShapeDtypeStruct((Rp, out_pad), jnp.float32),
        grid=grid,
        in_specs=in_specs,
        out_specs=pl.BlockSpec((br, out_pad), lambda i: (i, 0)),
        compiler_params=pltpu.CompilerParams(dimension_semantics=("parallel",)),
    )(xall, *params)
    return out[:R, :num_output]


# --------------------------- parameters & folding ---------------------------- #

def init_raw_params(key, num_output):
    """Torch-style parameters: conv/linear (W, b) and BN (gamma, beta, mean, var)."""
    def lin(k, cin, cout):
        kw, kb = jax.random.split(k)
        return (0.1 * jax.random.normal(kw, (cin, cout), jnp.float32),
                0.1 * jax.random.normal(kb, (cout,), jnp.float32))

    def bn(k, c):
        kg, kb, km, kv = jax.random.split(k, 4)
        return (1.0 + 0.1 * jax.random.normal(kg, (c,), jnp.float32),                # gamma
                0.1 * jax.random.normal(kb, (c,), jnp.float32),                      # beta
                0.1 * jax.random.normal(km, (c,), jnp.float32),                      # running mean
                1.0 + 0.1 * jnp.abs(jax.random.normal(kv, (c,), jnp.float32)))       # running var

    ks = jax.random.split(key, 11)
    return {
        "c1": lin(ks[0], FEATURE_NUM, C1), "bn1": bn(ks[1], C1),
        "c2": lin(ks[2], C1, C2),          "bn2": bn(ks[3], C2),
        "c3": lin(ks[4], C2, C3),          "bn3": bn(ks[5], C3),
        "f1": lin(ks[6], FC_IN, FC_H1),    "bnf1": bn(ks[7], FC_H1),
        "f2": lin(ks[8], FC_H1, FC_H2),    "bnf2": bn(ks[9], FC_H2),
        "f3": lin(ks[10], FC_H2, num_output),
    }


def fold_params(raw):
    """Fold bias + eval BatchNorm into (W*scale, shift) per layer; expand the conv
    weights to block-diagonal over GROUP grouped pooled positions, with conv1
    additionally split into even/odd-parity interleaved weights for the pool."""
    def fold(wb, bnp):
        w, b = wb
        g, be, m, v = bnp
        scale = g / jnp.sqrt(v + BN_EPS)
        shift = be - m * scale
        return w * scale[None, :], b * scale + shift

    def grouped(w, t):
        return (jnp.kron(jnp.eye(GROUP, dtype=w.dtype), w),
                jnp.tile(t, GROUP)[None, :])

    # conv1: input row layout is [pos0_even(66), pos0_odd(66), pos1_even, ...]
    w1f, t1f = fold(raw["c1"], raw["bn1"])                     # (66,16), (16,)
    z = jnp.zeros_like(w1f)
    w1e = jnp.kron(jnp.eye(GROUP, dtype=w1f.dtype),
                   jnp.concatenate([w1f, z], axis=0))          # (660, 80) even rows
    w1o = jnp.kron(jnp.eye(GROUP, dtype=w1f.dtype),
                   jnp.concatenate([z, w1f], axis=0))          # (660, 80) odd rows
    t1 = jnp.tile(t1f, GROUP)[None, :]                         # (1, 80)

    w2, t2 = grouped(*fold(raw["c2"], raw["bn2"]))
    w3, t3 = grouped(*fold(raw["c3"], raw["bn3"]))
    f1, u1 = fold(raw["f1"], raw["bnf1"])
    f2, u2 = fold(raw["f2"], raw["bnf2"])
    f3, u3 = raw["f3"]
    return [w1e, w1o, t1, w2, t2, w3, t3,
            f1, u1[None, :], f2, u2[None, :], f3, u3[None, :]]


# ------------------------------ plain-JAX ref -------------------------------- #

def reference_forward(x, raw, num_output):
    """Unfolded, torch-order replica of CNNBasic.forward (eval mode)."""
    B, L, C = x.shape
    Lp = L // 2

    def cbr(h, wb, bnp):
        w, b = wb
        g, be, m, v = bnp
        z = h @ w + b
        z = (z - m) / jnp.sqrt(v + BN_EPS) * g + be
        return jnp.maximum(z, 0.0)

    h1 = cbr(x.reshape(B * L, C), raw["c1"], raw["bn1"]).reshape(B, L, C1)
    pooled = jnp.max(h1[:, :2 * Lp].reshape(B, Lp, 2, C1), axis=2)
    h2 = cbr(pooled.reshape(B * Lp, C1), raw["c2"], raw["bn2"])
    h3 = cbr(h2, raw["c3"], raw["bn3"])
    flat = h3.reshape(-1, FC_IN)      # torch: permute back to (B, Lp, 16), reshape(-1, 80)
    a = cbr(flat, raw["f1"], raw["bnf1"])
    a = cbr(a, raw["f2"], raw["bnf2"])
    w3, b3 = raw["f3"]
    return a @ w3 + b3


# ----------------------------------- main ------------------------------------ #

if __name__ == "__main__":
    # featureNum=66, featureLength=10 -> featureSize=660.  B=4 so that
    # B*(L//2)*16 = 320 is divisible by prdFC_inputSize=80 (4 FC rows).
    B, L, NUM_OUTPUT = 4, 10, 6
    key = jax.random.PRNGKey(0)
    kx, kp = jax.random.split(key)
    x = jax.random.normal(kx, (B, L, FEATURE_NUM), jnp.float32)
    raw = init_raw_params(kp, NUM_OUTPUT)
    kparams = fold_params(raw)

    out = jax.block_until_ready(cnn_basic_forward(x, kparams, NUM_OUTPUT))
    ref = jax.block_until_ready(reference_forward(x, raw, NUM_OUTPUT))

    assert out.shape == ref.shape == (B * (L // 2) * C3 // FC_IN, NUM_OUTPUT)
    np.testing.assert_allclose(np.asarray(out), np.asarray(ref), rtol=1e-3, atol=1e-4)
    print("KERNEL_OK")
</pallas_src>

<mosaic_0001>
module attributes {stable_mosaic.version = 11 : i64} {
  func.func @_fused_kernel(%arg0: i32, %arg1: memref<8x660xf32, #tpu.memory_space<vmem>>, %arg2: memref<660x80xf32, #tpu.memory_space<vmem>>, %arg3: memref<660x80xf32, #tpu.memory_space<vmem>>, %arg4: memref<1x80xf32, #tpu.memory_space<vmem>>, %arg5: memref<80x80xf32, #tpu.memory_space<vmem>>, %arg6: memref<1x80xf32, #tpu.memory_space<vmem>>, %arg7: memref<80x80xf32, #tpu.memory_space<vmem>>, %arg8: memref<1x80xf32, #tpu.memory_space<vmem>>, %arg9: memref<80x64xf32, #tpu.memory_space<vmem>>, %arg10: memref<1x64xf32, #tpu.memory_space<vmem>>, %arg11: memref<64x64xf32, #tpu.memory_space<vmem>>, %arg12: memref<1x64xf32, #tpu.memory_space<vmem>>, %arg13: memref<64x128xf32, #tpu.memory_space<vmem>>, %arg14: memref<1x128xf32, #tpu.memory_space<vmem>>, %arg15: memref<8x128xf32, #tpu.memory_space<vmem>>) attributes {dimension_semantics = [#tpu.dimension_semantics<parallel>], iteration_bounds = array<i64: 1>, scalar_prefetch = 0 : i64, scratch_operands = 0 : i64, tpu.core_type = #tpu.core_type<tc>, window_params = [{transform_indices = @transform_0, window_bounds = array<i64: 8, 660>}, {pipeline_mode = #tpu.pipeline_mode<synchronous>, transform_indices = @transform_1, window_bounds = array<i64: 660, 80>}, {pipeline_mode = #tpu.pipeline_mode<synchronous>, transform_indices = @transform_2, window_bounds = array<i64: 660, 80>}, {pipeline_mode = #tpu.pipeline_mode<synchronous>, transform_indices = @transform_3, window_bounds = array<i64: 1, 80>}, {pipeline_mode = #tpu.pipeline_mode<synchronous>, transform_indices = @transform_4, window_bounds = array<i64: 80, 80>}, {pipeline_mode = #tpu.pipeline_mode<synchronous>, transform_indices = @transform_5, window_bounds = array<i64: 1, 80>}, {pipeline_mode = #tpu.pipeline_mode<synchronous>, transform_indices = @transform_6, window_bounds = array<i64: 80, 80>}, {pipeline_mode = #tpu.pipeline_mode<synchronous>, transform_indices = @transform_7, window_bounds = array<i64: 1, 80>}, {pipeline_mode = #tpu.pipeline_mode<synchronous>, transform_indices = @transform_8, window_bounds = array<i64: 80, 64>}, {pipeline_mode = #tpu.pipeline_mode<synchronous>, transform_indices = @transform_9, window_bounds = array<i64: 1, 64>}, {pipeline_mode = #tpu.pipeline_mode<synchronous>, transform_indices = @transform_10, window_bounds = array<i64: 64, 64>}, {pipeline_mode = #tpu.pipeline_mode<synchronous>, transform_indices = @transform_11, window_bounds = array<i64: 1, 64>}, {pipeline_mode = #tpu.pipeline_mode<synchronous>, transform_indices = @transform_12, window_bounds = array<i64: 64, 128>}, {pipeline_mode = #tpu.pipeline_mode<synchronous>, transform_indices = @transform_13, window_bounds = array<i64: 1, 128>}, {transform_indices = @transform_14, window_bounds = array<i64: 8, 128>}]} {
    %c0 = arith.constant 0 : index
    %c0_0 = arith.constant 0 : index
    %0 = vector.load %arg1[%c0, %c0_0] : memref<8x660xf32, #tpu.memory_space<vmem>>, vector<8x660xf32>
    %c0_1 = arith.constant 0 : index
    %c0_2 = arith.constant 0 : index
    %1 = vector.load %arg2[%c0_1, %c0_2] : memref<660x80xf32, #tpu.memory_space<vmem>>, vector<660x80xf32>
    %cst = arith.constant dense<0.000000e+00> : vector<8x80xf32>
    %2 = tpu.matmul %0, %1, %cst {dimension_numbers = #tpu.dot_dimension_numbers<[1], [0], [0], [1], [0, 0, 1, 1], [], []>} : vector<8x660xf32>, vector<660x80xf32>, vector<8x80xf32> -> vector<8x80xf32>
    %c0_3 = arith.constant 0 : index
    %c0_4 = arith.constant 0 : index
    %3 = vector.load %arg3[%c0_3, %c0_4] : memref<660x80xf32, #tpu.memory_space<vmem>>, vector<660x80xf32>
    %cst_5 = arith.constant dense<0.000000e+00> : vector<8x80xf32>
    %4 = tpu.matmul %0, %3, %cst_5 {dimension_numbers = #tpu.dot_dimension_numbers<[1], [0], [0], [1], [0, 0, 1, 1], [], []>} : vector<8x660xf32>, vector<660x80xf32>, vector<8x80xf32> -> vector<8x80xf32>
    %5 = arith.maximumf %2, %4 : vector<8x80xf32>
    %c0_6 = arith.constant 0 : index
    %c0_7 = arith.constant 0 : index
    %6 = vector.load %arg4[%c0_6, %c0_7] : memref<1x80xf32, #tpu.memory_space<vmem>>, vector<1x80xf32>
    %7 = vector.broadcast %6 : vector<1x80xf32> to vector<8x80xf32>
    %8 = arith.addf %5, %7 : vector<8x80xf32>
    %cst_8 = arith.constant 0.000000e+00 : f32
    %9 = vector.broadcast %cst_8 : f32 to vector<8x80xf32>
    %10 = arith.maximumf %8, %9 : vector<8x80xf32>
    %c0_9 = arith.constant 0 : index
    %c0_10 = arith.constant 0 : index
    %11 = vector.load %arg5[%c0_9, %c0_10] : memref<80x80xf32, #tpu.memory_space<vmem>>, vector<80x80xf32>
    %cst_11 = arith.constant dense<0.000000e+00> : vector<8x80xf32>
    %12 = tpu.matmul %10, %11, %cst_11 {dimension_numbers = #tpu.dot_dimension_numbers<[1], [0], [0], [1], [0, 0, 1, 1], [], []>} : vector<8x80xf32>, vector<80x80xf32>, vector<8x80xf32> -> vector<8x80xf32>
    %c0_12 = arith.constant 0 : index
    %c0_13 = arith.constant 0 : index
    %13 = vector.load %arg6[%c0_12, %c0_13] : memref<1x80xf32, #tpu.memory_space<vmem>>, vector<1x80xf32>
    %14 = vector.broadcast %13 : vector<1x80xf32> to vector<8x80xf32>
    %15 = arith.addf %12, %14 : vector<8x80xf32>
    %cst_14 = arith.constant 0.000000e+00 : f32
    %16 = vector.broadcast %cst_14 : f32 to vector<8x80xf32>
    %17 = arith.maximumf %15, %16 : vector<8x80xf32>
    %c0_15 = arith.constant 0 : index
    %c0_16 = arith.constant 0 : index
    %18 = vector.load %arg7[%c0_15, %c0_16] : memref<80x80xf32, #tpu.memory_space<vmem>>, vector<80x80xf32>
    %cst_17 = arith.constant dense<0.000000e+00> : vector<8x80xf32>
    %19 = tpu.matmul %17, %18, %cst_17 {dimension_numbers = #tpu.dot_dimension_numbers<[1], [0], [0], [1], [0, 0, 1, 1], [], []>} : vector<8x80xf32>, vector<80x80xf32>, vector<8x80xf32> -> vector<8x80xf32>
    %c0_18 = arith.constant 0 : index
    %c0_19 = arith.constant 0 : index
    %20 = vector.load %arg8[%c0_18, %c0_19] : memref<1x80xf32, #tpu.memory_space<vmem>>, vector<1x80xf32>
    %21 = vector.broadcast %20 : vector<1x80xf32> to vector<8x80xf32>
    %22 = arith.addf %19, %21 : vector<8x80xf32>
    %cst_20 = arith.constant 0.000000e+00 : f32
    %23 = vector.broadcast %cst_20 : f32 to vector<8x80xf32>
    %24 = arith.maximumf %22, %23 : vector<8x80xf32>
    %c0_21 = arith.constant 0 : index
    %c0_22 = arith.constant 0 : index
    %25 = vector.load %arg9[%c0_21, %c0_22] : memref<80x64xf32, #tpu.memory_space<vmem>>, vector<80x64xf32>
    %cst_23 = arith.constant dense<0.000000e+00> : vector<8x64xf32>
    %26 = tpu.matmul %24, %25, %cst_23 {dimension_numbers = #tpu.dot_dimension_numbers<[1], [0], [0], [1], [0, 0, 1, 1], [], []>} : vector<8x80xf32>, vector<80x64xf32>, vector<8x64xf32> -> vector<8x64xf32>
    %c0_24 = arith.constant 0 : index
    %c0_25 = arith.constant 0 : index
    %27 = vector.load %arg10[%c0_24, %c0_25] : memref<1x64xf32, #tpu.memory_space<vmem>>, vector<1x64xf32>
    %28 = vector.broadcast %27 : vector<1x64xf32> to vector<8x64xf32>
    %29 = arith.addf %26, %28 : vector<8x64xf32>
    %cst_26 = arith.constant 0.000000e+00 : f32
    %30 = vector.broadcast %cst_26 : f32 to vector<8x64xf32>
    %31 = arith.maximumf %29, %30 : vector<8x64xf32>
    %c0_27 = arith.constant 0 : index
    %c0_28 = arith.constant 0 : index
    %32 = vector.load %arg11[%c0_27, %c0_28] : memref<64x64xf32, #tpu.memory_space<vmem>>, vector<64x64xf32>
    %cst_29 = arith.constant dense<0.000000e+00> : vector<8x64xf32>
    %33 = tpu.matmul %31, %32, %cst_29 {dimension_numbers = #tpu.dot_dimension_numbers<[1], [0], [0], [1], [0, 0, 1, 1], [], []>} : vector<8x64xf32>, vector<64x64xf32>, vector<8x64xf32> -> vector<8x64xf32>
    %c0_30 = arith.constant 0 : index
    %c0_31 = arith.constant 0 : index
    %34 = vector.load %arg12[%c0_30, %c0_31] : memref<1x64xf32, #tpu.memory_space<vmem>>, vector<1x64xf32>
    %35 = vector.broadcast %34 : vector<1x64xf32> to vector<8x64xf32>
    %36 = arith.addf %33, %35 : vector<8x64xf32>
    %cst_32 = arith.constant 0.000000e+00 : f32
    %37 = vector.broadcast %cst_32 : f32 to vector<8x64xf32>
    %38 = arith.maximumf %36, %37 : vector<8x64xf32>
    %c0_33 = arith.constant 0 : index
    %c0_34 = arith.constant 0 : index
    %39 = vector.load %arg13[%c0_33, %c0_34] : memref<64x128xf32, #tpu.memory_space<vmem>>, vector<64x128xf32>
    %cst_35 = arith.constant dense<0.000000e+00> : vector<8x128xf32>
    %40 = tpu.matmul %38, %39, %cst_35 {dimension_numbers = #tpu.dot_dimension_numbers<[1], [0], [0], [1], [0, 0, 1, 1], [], []>} : vector<8x64xf32>, vector<64x128xf32>, vector<8x128xf32> -> vector<8x128xf32>
    %c0_36 = arith.constant 0 : index
    %c0_37 = arith.constant 0 : index
    %41 = vector.load %arg14[%c0_36, %c0_37] : memref<1x128xf32, #tpu.memory_space<vmem>>, vector<1x128xf32>
    %42 = vector.broadcast %41 : vector<1x128xf32> to vector<8x128xf32>
    %43 = arith.addf %40, %42 : vector<8x128xf32>
    %c0_38 = arith.constant 0 : index
    %c0_39 = arith.constant 0 : index
    %44 = vector.load %arg15[%c0_38, %c0_39] : memref<8x128xf32, #tpu.memory_space<vmem>>, vector<8x128xf32>
    tpu.vector_store %arg15[%c0_38, %c0_39], %43 {strides = array<i32>} : memref<8x128xf32, #tpu.memory_space<vmem>>, vector<8x128xf32>,
    return
  }
  func.func @transform_0(%arg0: i32) -> (i32, i32) {
    %c0_i32 = arith.constant 0 : i32
    %c0_i32_0 = arith.constant 0 : i32
    return %arg0, %c0_i32 : i32, i32
  }
  func.func @transform_1(%arg0: i32) -> (i32, i32) {
    %c0_i32 = arith.constant 0 : i32
    %c0_i32_0 = arith.constant 0 : i32
    %c0_i32_1 = arith.constant 0 : i32
    return %c0_i32, %c0_i32_0 : i32, i32
  }
  func.func @transform_2(%arg0: i32) -> (i32, i32) {
    %c0_i32 = arith.constant 0 : i32
    %c0_i32_0 = arith.constant 0 : i32
    %c0_i32_1 = arith.constant 0 : i32
    return %c0_i32, %c0_i32_0 : i32, i32
  }
  func.func @transform_3(%arg0: i32) -> (i32, i32) {
    %c0_i32 = arith.constant 0 : i32
    %c0_i32_0 = arith.constant 0 : i32
    %c0_i32_1 = arith.constant 0 : i32
    return %c0_i32, %c0_i32_0 : i32, i32
  }
  func.func @transform_4(%arg0: i32) -> (i32, i32) {
    %c0_i32 = arith.constant 0 : i32
    %c0_i32_0 = arith.constant 0 : i32
    %c0_i32_1 = arith.constant 0 : i32
    return %c0_i32, %c0_i32_0 : i32, i32
  }
  func.func @transform_5(%arg0: i32) -> (i32, i32) {
    %c0_i32 = arith.constant 0 : i32
    %c0_i32_0 = arith.constant 0 : i32
    %c0_i32_1 = arith.constant 0 : i32
    return %c0_i32, %c0_i32_0 : i32, i32
  }
  func.func @transform_6(%arg0: i32) -> (i32, i32) {
    %c0_i32 = arith.constant 0 : i32
    %c0_i32_0 = arith.constant 0 : i32
    %c0_i32_1 = arith.constant 0 : i32
    return %c0_i32, %c0_i32_0 : i32, i32
  }
  func.func @transform_7(%arg0: i32) -> (i32, i32) {
    %c0_i32 = arith.constant 0 : i32
    %c0_i32_0 = arith.constant 0 : i32
    %c0_i32_1 = arith.constant 0 : i32
    return %c0_i32, %c0_i32_0 : i32, i32
  }
  func.func @transform_8(%arg0: i32) -> (i32, i32) {
    %c0_i32 = arith.constant 0 : i32
    %c0_i32_0 = arith.constant 0 : i32
    %c0_i32_1 = arith.constant 0 : i32
    return %c0_i32, %c0_i32_0 : i32, i32
  }
  func.func @transform_9(%arg0: i32) -> (i32, i32) {
    %c0_i32 = arith.constant 0 : i32
    %c0_i32_0 = arith.constant 0 : i32
    %c0_i32_1 = arith.constant 0 : i32
    return %c0_i32, %c0_i32_0 : i32, i32
  }
  func.func @transform_10(%arg0: i32) -> (i32, i32) {
    %c0_i32 = arith.constant 0 : i32
    %c0_i32_0 = arith.constant 0 : i32
    %c0_i32_1 = arith.constant 0 : i32
    return %c0_i32, %c0_i32_0 : i32, i32
  }
  func.func @transform_11(%arg0: i32) -> (i32, i32) {
    %c0_i32 = arith.constant 0 : i32
    %c0_i32_0 = arith.constant 0 : i32
    %c0_i32_1 = arith.constant 0 : i32
    return %c0_i32, %c0_i32_0 : i32, i32
  }
  func.func @transform_12(%arg0: i32) -> (i32, i32) {
    %c0_i32 = arith.constant 0 : i32
    %c0_i32_0 = arith.constant 0 : i32
    %c0_i32_1 = arith.constant 0 : i32
    return %c0_i32, %c0_i32_0 : i32, i32
  }
  func.func @transform_13(%arg0: i32) -> (i32, i32) {
    %c0_i32 = arith.constant 0 : i32
    %c0_i32_0 = arith.constant 0 : i32
    %c0_i32_1 = arith.constant 0 : i32
    return %c0_i32, %c0_i32_0 : i32, i32
  }
  func.func @transform_14(%arg0: i32) -> (i32, i32) {
    %c0_i32 = arith.constant 0 : i32
    %c0_i32_0 = arith.constant 0 : i32
    return %arg0, %c0_i32 : i32, i32
  }
}

</mosaic_0001>

<llo_original>
// kernel: tpu_custom_call.1
$region0: #{tpu_custom_call.1}
  #allocation0 [shape = 'u32[]', space=smem, size = 0x4, offset = 0x4, fixed_abs, tag = 'smem constant byte address 0x4 - core index']
  #allocation1 [shape = 'u32[144,128]{1,0:T(1,128)}', space=vmem, size = 0x12000, scoped, tag = 'internal scratch']
  %s0 = inlined_call_operand.vmem [shape: f32[8,660], index: 0, kind: input, shape index: {}]
  %s1 = inlined_call_operand.vmem [shape: f32[660,80], index: 1, kind: input, shape index: {}]
  %s2 = inlined_call_operand.vmem [shape: f32[660,80], index: 2, kind: input, shape index: {}]
  %s3 = inlined_call_operand.vmem [shape: f32[1,80], index: 3, kind: input, shape index: {}]
  %s4 = inlined_call_operand.vmem [shape: f32[80,80], index: 4, kind: input, shape index: {}]
  %s5 = inlined_call_operand.vmem [shape: f32[1,80], index: 5, kind: input, shape index: {}]
  %s6 = inlined_call_operand.vmem [shape: f32[80,80], index: 6, kind: input, shape index: {}]
  %s7 = inlined_call_operand.vmem [shape: f32[1,80], index: 7, kind: input, shape index: {}]
  %s8 = inlined_call_operand.vmem [shape: f32[80,64], index: 8, kind: input, shape index: {}]
  %s9 = inlined_call_operand.vmem [shape: f32[1,64], index: 9, kind: input, shape index: {}]
  %s10 = inlined_call_operand.vmem [shape: f32[64,64], index: 10, kind: input, shape index: {}]
  %s11 = inlined_call_operand.vmem [shape: f32[1,64], index: 11, kind: input, shape index: {}]
  %s12 = inlined_call_operand.vmem [shape: f32[64,128], index: 12, kind: input, shape index: {}]
  %s13 = inlined_call_operand.vmem [shape: f32[1,128], index: 13, kind: input, shape index: {}]
  %s14 = inlined_call_operand.hbm [shape: f32[8,128], index: 14, kind: output, shape index: {}]
  %s15 = sld [smem:[#allocation0]]
  $region66: #{tpu_custom_call.1} parent=0
    _
  %s17 = ssub.s32 1, %s15
  %s18 = scalar_select 0, %s17, %s15
  $region1: #{tpu_custom_call.1} parent=0
    #allocation2 [shape = 'u8[4096]{0}', space=vmem, size = 0x1000, scoped, tag = 'output window, operand 0, single buffered']
    #allocation3 [shape = 's32[1]{0}', space=sflag, size = 0x4, scoped, tag = 'scoped memory for tpu_custom_call.1']
    %19 = vsyncpa [#allocation3], 0
    // Predicated region
    $region2: #{tpu_custom_call.1} parent=1 // pred_check
      _
    $region3: #{tpu_custom_call.1} parent=1 // pred_check_branch
      %21 = sbr.rel (0) target = $region5
    $region4: #{tpu_custom_call.1} parent=1 // pred_region
      _
    $region5: #{tpu_custom_call.1} parent=1 // pred_fallthru
      _
    // Predicated region
    $region6: #{tpu_custom_call.1} parent=1 // pred_check
      _
    $region7: #{tpu_custom_call.1} parent=1 // pred_check_branch
      %23 = sbr.rel (0) target = $region9
    $region8: #{tpu_custom_call.1} parent=1 // pred_region
      _
    $region9: #{tpu_custom_call.1} parent=1 // pred_fallthru
      _
    // Predicated region
    $region10: #{tpu_custom_call.1} parent=1 // pred_check
      _
    $region11: #{tpu_custom_call.1} parent=1 // pred_check_branch
      %25 = sbr.rel (0) target = $region13
    $region12: #{tpu_custom_call.1} parent=1 // pred_region
      _
    $region13: #{tpu_custom_call.1} parent=1 // pred_fallthru
      _
    // Predicated region
    $region14: #{tpu_custom_call.1} parent=1 // pred_check
      _
    $region15: #{tpu_custom_call.1} parent=1 // pred_check_branch
      %27 = sbr.rel (0) target = $region17
    $region16: #{tpu_custom_call.1} parent=1 // pred_region
      _
    $region17: #{tpu_custom_call.1} parent=1 // pred_fallthru
      _
    // Predicated region
    $region18: #{tpu_custom_call.1} parent=1 // pred_check
      _
    $region19: #{tpu_custom_call.1} parent=1 // pred_check_branch
      %29 = sbr.rel (0) target = $region21
    $region20: #{tpu_custom_call.1} parent=1 // pred_region
      _
    $region21: #{tpu_custom_call.1} parent=1 // pred_fallthru
      _
    // Predicated region
    $region22: #{tpu_custom_call.1} parent=1 // pred_check
      _
    $region23: #{tpu_custom_call.1} parent=1 // pred_check_branch
      %31 = sbr.rel (0) target = $region25
    $region24: #{tpu_custom_call.1} parent=1 // pred_region
      _
    $region25: #{tpu_custom_call.1} parent=1 // pred_fallthru
      _
    // Predicated region
    $region26: #{tpu_custom_call.1} parent=1 // pred_check
      _
    $region27: #{tpu_custom_call.1} parent=1 // pred_check_branch
      %33 = sbr.rel (0) target = $region29
    $region28: #{tpu_custom_call.1} parent=1 // pred_region
      _
    $region29: #{tpu_custom_call.1} parent=1 // pred_fallthru
      _
    // Predicated region
    $region30: #{tpu_custom_call.1} parent=1 // pred_check
      _
    $region31: #{tpu_custom_call.1} parent=1 // pred_check_branch
      %35 = sbr.rel (0) target = $region33
    $region32: #{tpu_custom_call.1} parent=1 // pred_region
      _
    $region33: #{tpu_custom_call.1} parent=1 // pred_fallthru
      _
    // Predicated region
    $region34: #{tpu_custom_call.1} parent=1 // pred_check
      _
    $region35: #{tpu_custom_call.1} parent=1 // pred_check_branch
      %37 = sbr.rel (0) target = $region37
    $region36: #{tpu_custom_call.1} parent=1 // pred_region
      _
    $region37: #{tpu_custom_call.1} parent=1 // pred_fallthru
      _
    // Predicated region
    $region38: #{tpu_custom_call.1} parent=1 // pred_check
      _
    $region39: #{tpu_custom_call.1} parent=1 // pred_check_branch
      %39 = sbr.rel (0) target = $region41
    $region40: #{tpu_custom_call.1} parent=1 // pred_region
      _
    $region41: #{tpu_custom_call.1} parent=1 // pred_fallthru
      _
    // Predicated region
    $region42: #{tpu_custom_call.1} parent=1 // pred_check
      _
    $region43: #{tpu_custom_call.1} parent=1 // pred_check_branch
      %41 = sbr.rel (0) target = $region45
    $region44: #{tpu_custom_call.1} parent=1 // pred_region
      _
    $region45: #{tpu_custom_call.1} parent=1 // pred_fallthru
      _
    // Predicated region
    $region46: #{tpu_custom_call.1} parent=1 // pred_check
      _
    $region47: #{tpu_custom_call.1} parent=1 // pred_check_branch
      %43 = sbr.rel (0) target = $region49
    $region48: #{tpu_custom_call.1} parent=1 // pred_region
      _
    $region49: #{tpu_custom_call.1} parent=1 // pred_fallthru
      _
    // Predicated region
    $region50: #{tpu_custom_call.1} parent=1 // pred_check
      _
    $region51: #{tpu_custom_call.1} parent=1 // pred_check_branch
      %45 = sbr.rel (0) target = $region53
    $region52: #{tpu_custom_call.1} parent=1 // pred_region
      _
    $region53: #{tpu_custom_call.1} parent=1 // pred_fallthru
      _
    // Predicated region
    $region54: #{tpu_custom_call.1} parent=1 // pred_check
      _
    $region55: #{tpu_custom_call.1} parent=1 // pred_check_branch
      %47 = sbr.rel (0) target = $region57
    $region56: #{tpu_custom_call.1} parent=1 // pred_region
      _
    $region57: #{tpu_custom_call.1} parent=1 // pred_fallthru
      _
    %v48 = vld [vmem:[%s0] sm:$0xff]
    %v49 = vld [vmem:[%s0 + $0x8] sm:$0xff]
    %v50 = vld [vmem:[%s0 + $0x10] sm:$0xff]
    %v51 = vld [vmem:[%s0 + $0x18] sm:$0xff]
    %v52 = vld [vmem:[%s0 + $0x20] sm:$0xff]
    %v53 = vld [vmem:[%s0 + $0x28] sm:$0xff]
    %v54 = vld [vmem:[%s1] sm:$0xff]
    %v55 = vld [vmem:[%s1 + $0x8] sm:$0xff]
    %v56 = vld [vmem:[%s1 + $0x10] sm:$0xff]
    %v57 = vld [vmem:[%s1 + $0x18] sm:$0xff]
    %v58 = vld [vmem:[%s1 + $0x20] sm:$0xff]
    %v59 = vld [vmem:[%s1 + $0x28] sm:$0xff]
    %v60 = vld [vmem:[%s1 + $0x30] sm:$0xff]
    %v61 = vld [vmem:[%s1 + $0x38] sm:$0xff]
    %v62 = vld [vmem:[%s1 + $0x40] sm:$0xff]
    %v63 = vld [vmem:[%s1 + $0x48] sm:$0xff]
    %v64 = vld [vmem:[%s1 + $0x50] sm:$0xff]
    %v65 = vld [vmem:[%s1 + $0x58] sm:$0xff]
    %v66 = vld [vmem:[%s1 + $0x60] sm:$0xff]
    %v67 = vld [vmem:[%s1 + $0x68] sm:$0xff]
    %v68 = vld [vmem:[%s1 + $0x70] sm:$0xff]
    %v69 = vld [vmem:[%s1 + $0x78] sm:$0xff]
    %v70 = vld [vmem:[%s1 + $0x80] sm:$0xff]
    %v71 = vld [vmem:[%s1 + $0x88] sm:$0xff]
    %v72 = vld [vmem:[%s1 + $0x90] sm:$0xff]
    %v73 = vld [vmem:[%s1 + $0x98] sm:$0xff]
    %v74 = vld [vmem:[%s1 + $0xa0] sm:$0xff]
    %v75 = vld [vmem:[%s1 + $0xa8] sm:$0xff]
    %v76 = vld [vmem:[%s1 + $0xb0] sm:$0xff]
    %v77 = vld [vmem:[%s1 + $0xb8] sm:$0xff]
    %v78 = vld [vmem:[%s1 + $0xc0] sm:$0xff]
    %v79 = vld [vmem:[%s1 + $0xc8] sm:$0xff]
    %v80 = vld [vmem:[%s1 + $0xd0] sm:$0xff]
    %v81 = vld [vmem:[%s1 + $0xd8] sm:$0xff]
    %v82 = vld [vmem:[%s1 + $0xe0] sm:$0xff]
    %v83 = vld [vmem:[%s1 + $0xe8] sm:$0xff]
    %v84 = vld [vmem:[%s1 + $0xf0] sm:$0xff]
    %v85 = vld [vmem:[%s1 + $0xf8] sm:$0xff]
    %v86 = vld [vmem:[%s1 + $0x100] sm:$0xff]
    %v87 = vld [vmem:[%s1 + $0x108] sm:$0xff]
    %v88 = vld [vmem:[%s1 + $0x110] sm:$0xff]
    %v89 = vld [vmem:[%s1 + $0x118] sm:$0xff]
    %v90 = vld [vmem:[%s1 + $0x120] sm:$0xff]
    %v91 = vld [vmem:[%s1 + $0x128] sm:$0xff]
    %v92 = vld [vmem:[%s1 + $0x130] sm:$0xff]
    %v93 = vld [vmem:[%s1 + $0x138] sm:$0xff]
    %v94 = vld [vmem:[%s1 + $0x140] sm:$0xff]
    %v95 = vld [vmem:[%s1 + $0x148] sm:$0xff]
    %v96 = vld [vmem:[%s1 + $0x150] sm:$0xff]
    %v97 = vld [vmem:[%s1 + $0x158] sm:$0xff]
    %v98 = vld [vmem:[%s1 + $0x160] sm:$0xff]
    %v99 = vld [vmem:[%s1 + $0x168] sm:$0xff]
    %v100 = vld [vmem:[%s1 + $0x170] sm:$0xff]
    %v101 = vld [vmem:[%s1 + $0x178] sm:$0xff]
    %v102 = vld [vmem:[%s1 + $0x180] sm:$0xff]
    %v103 = vld [vmem:[%s1 + $0x188] sm:$0xff]
    %v104 = vld [vmem:[%s1 + $0x190] sm:$0xff]
    %v105 = vld [vmem:[%s1 + $0x198] sm:$0xff]
    %v106 = vld [vmem:[%s1 + $0x1a0] sm:$0xff]
    %v107 = vld [vmem:[%s1 + $0x1a8] sm:$0xff]
    %v108 = vld [vmem:[%s1 + $0x1b0] sm:$0xff]
    %v109 = vld [vmem:[%s1 + $0x1b8] sm:$0xff]
    %v110 = vld [vmem:[%s1 + $0x1c0] sm:$0xff]
    %v111 = vld [vmem:[%s1 + $0x1c8] sm:$0xff]
    %v112 = vld [vmem:[%s1 + $0x1d0] sm:$0xff]
    %v113 = vld [vmem:[%s1 + $0x1d8] sm:$0xff]
    %v114 = vld [vmem:[%s1 + $0x1e0] sm:$0xff]
    %v115 = vld [vmem:[%s1 + $0x1e8] sm:$0xff]
    %v116 = vld [vmem:[%s1 + $0x1f0] sm:$0xff]
    %v117 = vld [vmem:[%s1 + $0x1f8] sm:$0xff]
    %v118 = vld [vmem:[%s1 + $0x200] sm:$0xff]
    %v119 = vld [vmem:[%s1 + $0x208] sm:$0xff]
    %v120 = vld [vmem:[%s1 + $0x210] sm:$0xff]
    %v121 = vld [vmem:[%s1 + $0x218] sm:$0xff]
    %v122 = vld [vmem:[%s1 + $0x220] sm:$0xff]
    %v123 = vld [vmem:[%s1 + $0x228] sm:$0xff]
    %v124 = vld [vmem:[%s1 + $0x230] sm:$0xff]
    %v125 = vld [vmem:[%s1 + $0x238] sm:$0xff]
    %v126 = vld [vmem:[%s1 + $0x240] sm:$0xff]
    %v127 = vld [vmem:[%s1 + $0x248] sm:$0xff]
    %v128 = vld [vmem:[%s1 + $0x250] sm:$0xff]
    %v129 = vld [vmem:[%s1 + $0x258] sm:$0xff]
    %v130 = vld [vmem:[%s1 + $0x260] sm:$0xff]
    %v131 = vld [vmem:[%s1 + $0x268] sm:$0xff]
    %v132 = vld [vmem:[%s1 + $0x270] sm:$0xff]
    %v133 = vld [vmem:[%s1 + $0x278] sm:$0xff]
    %v134 = vld [vmem:[%s1 + $0x280] sm:$0xff]
    %v135 = vld [vmem:[%s1 + $0x288] sm:$0xff]
    %v136 = vld [vmem:[%s1 + $0x290] sm:$0xf]
    %vm137 = vcmask 162816
    %v139 = vsel %vm137, %v53, 0
    %vm141 = vcmask 1043456
    %v143 = vsel %vm141, %v136, 0
    %145 = vmatprep.subr.mxu0 0.0
    %146 = vmatpush1.msra.mxu0 %v54
    %147 = vmatprep.subr.mxu0 0.0
    %148 = vmatpush1.msra.mxu0 %v55
    %149 = vmatprep.subr.mxu0 0.0
    %150 = vmatpush1.msra.mxu0 %v56
    %151 = vmatprep.subr.mxu0 0.0
    %152 = vmatpush1.msra.mxu0 %v57
    %153 = vmatprep.subr.mxu0 0.0
    %154 = vmatpush1.msra.mxu0 %v58
    %155 = vmatprep.subr.mxu0 0.0
    %156 = vmatpush1.msra.mxu0 %v59
    %157 = vmatprep.subr.mxu0 0.0
    %158 = vmatpush1.msra.mxu0 %v60
    %159 = vmatprep.subr.mxu0 0.0
    %160 = vmatpush1.msra.mxu0 %v61
    %161 = vmatprep.subr.mxu0 0.0
    %162 = vmatpush1.msra.mxu0 %v62
    %163 = vmatprep.subr.mxu0 0.0
    %164 = vmatpush1.msra.mxu0 %v63
    %165 = vmatprep.subr.mxu0 0.0
    %166 = vmatpush1.msra.mxu0 %v64
    %167 = vmatprep.subr.mxu0 0.0
    %168 = vmatpush1.msra.mxu0 %v65
    %169 = vmatprep.subr.mxu0 0.0
    %170 = vmatpush1.msra.mxu0 %v66
    %171 = vmatprep.subr.mxu0 0.0
    %172 = vmatpush1.msra.mxu0 %v67
    %173 = vmatprep.subr.mxu0 0.0
    %174 = vmatpush1.msra.mxu0 %v68
    %175 = vmatprep.subr.mxu0 0.0
    %176 = vmatpush1.msra.mxu0 %v69
    %177 = vmatprep.subr.mxu0 0.0
    %178 = vmatpush1.msra.mxu0 %v70
    %179 = vmatprep.subr.mxu0 0.0
    %180 = vmatpush1.msra.mxu0 %v71
    %181 = vmatprep.subr.mxu0 0.0
    %182 = vmatpush1.msra.mxu0 %v72
    %183 = vmatprep.subr.mxu0 0.0
    %184 = vmatpush1.msra.mxu0 %v73
    %185 = vmatprep.subr.mxu0 0.0
    %186 = vmatpush1.msra.mxu0 %v74
    %187 = vmatprep.subr.mxu0 0.0
    %188 = vmatpush1.msra.mxu0 %v75
    %189 = vmatprep.subr.mxu0 0.0
    %190 = vmatpush1.msra.mxu0 %v76
    %191 = vmatprep.subr.mxu0 0.0
    %192 = vmatpush1.msra.mxu0 %v77
    %193 = vmatprep.subr.mxu0 0.0
    %194 = vmatpush1.msra.mxu0 %v78
    %195 = vmatprep.subr.mxu0 0.0
    %196 = vmatpush1.msra.mxu0 %v79
    %197 = vmatprep.subr.mxu0 0.0
    %198 = vmatpush1.msra.mxu0 %v80
    %199 = vmatprep.subr.mxu0 0.0
    %200 = vmatpush1.msra.mxu0 %v81
    %201 = vmatprep.subr.mxu0 0.0
    %202 = vmatpush1.msra.mxu0 %v82
    %203 = vmatprep.subr.mxu0 0.0
    %204 = vmatpush1.msra.mxu0 %v83
    %205 = vmatprep.subr.mxu0 0.0
    %206 = vmatpush1.msra.mxu0 %v84
    %207 = vmatprep.subr.mxu0 0.0
    %208 = vmatpush1.msra.mxu0 %v85
    %209 = vmatprep.mubr.f32.mxu0 %v49
    %210 = vmatmul.mubr.f32.gmra.mrb[0].mxu0 %v48
    %v211 = vpop.f32.mrb[0].mxu0
    %v212 = vadd.f32 0.0, %v211
    %v213 = vpop.f32.mrb[0].mxu0
    %214 = vdwg.mxu0
    %215 = vmatprep.subr.mxu0 0.0
    %216 = vmatpush1.msra.mxu0 %v86
    %217 = vmatprep.subr.mxu0 0.0
    %218 = vmatpush1.msra.mxu0 %v87
    %219 = vmatprep.subr.mxu0 0.0
    %220 = vmatpush1.msra.mxu0 %v88
    %221 = vmatprep.subr.mxu0 0.0
    %222 = vmatpush1.msra.mxu0 %v89
    %223 = vmatprep.subr.mxu0 0.0
    %224 = vmatpush1.msra.mxu0 %v90
    %225 = vmatprep.subr.mxu0 0.0
    %226 = vmatpush1.msra.mxu0 %v91
    %227 = vmatprep.subr.mxu0 0.0
    %228 = vmatpush1.msra.mxu0 %v92
    %229 = vmatprep.subr.mxu0 0.0
    %230 = vmatpush1.msra.mxu0 %v93
    %231 = vmatprep.subr.mxu0 0.0
    %232 = vmatpush1.msra.mxu0 %v94
    %233 = vmatprep.subr.mxu0 0.0
    %234 = vmatpush1.msra.mxu0 %v95
    %235 = vmatprep.subr.mxu0 0.0
    %236 = vmatpush1.msra.mxu0 %v96
    %237 = vmatprep.subr.mxu0 0.0
    %238 = vmatpush1.msra.mxu0 %v97
    %239 = vmatprep.subr.mxu0 0.0
    %240 = vmatpush1.msra.mxu0 %v98
    %241 = vmatprep.subr.mxu0 0.0
    %242 = vmatpush1.msra.mxu0 %v99
    %243 = vmatprep.subr.mxu0 0.0
    %244 = vmatpush1.msra.mxu0 %v100
    %245 = vmatprep.subr.mxu0 0.0
    %246 = vmatpush1.msra.mxu0 %v101
    %247 = vmatprep.subr.mxu0 0.0
    %248 = vmatpush1.msra.mxu0 %v102
    %249 = vmatprep.subr.mxu0 0.0
    %250 = vmatpush1.msra.mxu0 %v103
    %251 = vmatprep.subr.mxu0 0.0
    %252 = vmatpush1.msra.mxu0 %v104
    %253 = vmatprep.subr.mxu0 0.0
    %254 = vmatpush1.msra.mxu0 %v105
    %255 = vmatprep.subr.mxu0 0.0
    %256 = vmatpush1.msra.mxu0 %v106
    %257 = vmatprep.subr.mxu0 0.0
    %258 = vmatpush1.msra.mxu0 %v107
    %259 = vmatprep.subr.mxu0 0.0
    %260 = vmatpush1.msra.mxu0 %v108
    %261 = vmatprep.subr.mxu0 0.0
    %262 = vmatpush1.msra.mxu0 %v109
    %263 = vmatprep.subr.mxu0 0.0
    %264 = vmatpush1.msra.mxu0 %v110
    %265 = vmatprep.subr.mxu0 0.0
    %266 = vmatpush1.msra.mxu0 %v111
    %267 = vmatprep.subr.mxu0 0.0
    %268 = vmatpush1.msra.mxu0 %v112
    %269 = vmatprep.subr.mxu0 0.0
    %270 = vmatpush1.msra.mxu0 %v113
    %271 = vmatprep.subr.mxu0 0.0
    %272 = vmatpush1.msra.mxu0 %v114
    %273 = vmatprep.subr.mxu0 0.0
    %274 = vmatpush1.msra.mxu0 %v115
    %275 = vmatprep.subr.mxu0 0.0
    %276 = vmatpush1.msra.mxu0 %v116
    %277 = vmatprep.subr.mxu0 0.0
    %278 = vmatpush1.msra.mxu0 %v117
    %279 = vmatprep.mubr.f32.mxu0 %v51
    %280 = vmatmul.mubr.f32.gmra.mrb[0].mxu0 %v50
    %v281 = vpop.f32.mrb[0].mxu0
    %v282 = vadd.f32 %v212, %v281
    %v283 = vpop.f32.mrb[0].mxu0
    %284 = vdwg.mxu0
    %285 = vmatprep.subr.mxu0 0.0
    %286 = vmatpush1.msra.mxu0 %v118
    %287 = vmatprep.subr.mxu0 0.0
    %288 = vmatpush1.msra.mxu0 %v119
    %289 = vmatprep.subr.mxu0 0.0
    %290 = vmatpush1.msra.mxu0 %v120
    %291 = vmatprep.subr.mxu0 0.0
    %292 = vmatpush1.msra.mxu0 %v121
    %293 = vmatprep.subr.mxu0 0.0
    %294 = vmatpush1.msra.mxu0 %v122
    %295 = vmatprep.subr.mxu0 0.0
    %296 = vmatpush1.msra.mxu0 %v123
    %297 = vmatprep.subr.mxu0 0.0
    %298 = vmatpush1.msra.mxu0 %v124
    %299 = vmatprep.subr.mxu0 0.0
    %300 = vmatpush1.msra.mxu0 %v125
    %301 = vmatprep.subr.mxu0 0.0
    %302 = vmatpush1.msra.mxu0 %v126
    %303 = vmatprep.subr.mxu0 0.0
    %304 = vmatpush1.msra.mxu0 %v127
    %305 = vmatprep.subr.mxu0 0.0
    %306 = vmatpush1.msra.mxu0 %v128
    %307 = vmatprep.subr.mxu0 0.0
    %308 = vmatpush1.msra.mxu0 %v129
    %309 = vmatprep.subr.mxu0 0.0
    %310 = vmatpush1.msra.mxu0 %v130
    %311 = vmatprep.subr.mxu0 0.0
    %312 = vmatpush1.msra.mxu0 %v131
    %313 = vmatprep.subr.mxu0 0.0
    %314 = vmatpush1.msra.mxu0 %v132
    %315 = vmatprep.subr.mxu0 0.0
    %316 = vmatpush1.msra.mxu0 %v133
    %317 = vmatprep.subr.mxu0 0.0
    %318 = vmatpush1.msra.mxu0 %v134
    %319 = vmatprep.subr.mxu0 0.0
    %320 = vmatpush1.msra.mxu0 %v135
    %321 = vmatprep.subr.mxu0 0.0
    %322 = vmatpush1.msra.mxu0 %v143
    %323 = vmatprep.subr.mxu0 0.0
    %324 = vmatpush1.msra.mxu0 0.0
    %325 = vmatprep.subr.mxu0 0.0
    %326 = vmatpush1.msra.mxu0 0.0
    %327 = vmatprep.subr.mxu0 0.0
    %328 = vmatpush1.msra.mxu0 0.0
    %329 = vmatprep.subr.mxu0 0.0
    %330 = vmatpush1.msra.mxu0 0.0
    %331 = vmatprep.subr.mxu0 0.0
    %332 = vmatpush1.msra.mxu0 0.0
    %333 = vmatprep.subr.mxu0 0.0
    %334 = vmatpush1.msra.mxu0 0.0
    %335 = vmatprep.subr.mxu0 0.0
    %336 = vmatpush1.msra.mxu0 0.0
    %337 = vmatprep.subr.mxu0 0.0
    %338 = vmatpush1.msra.mxu0 0.0
    %339 = vmatprep.subr.mxu0 0.0
    %340 = vmatpush1.msra.mxu0 0.0
    %341 = vmatprep.subr.mxu0 0.0
    %342 = vmatpush1.msra.mxu0 0.0
    %343 = vmatprep.subr.mxu0 0.0
    %344 = vmatpush1.msra.mxu0 0.0
    %345 = vmatprep.subr.mxu0 0.0
    %346 = vmatpush1.msra.mxu0 0.0
    %347 = vmatprep.subr.mxu0 0.0
    %348 = vmatpush1.msra.mxu0 0.0
    %349 = vmatprep.mubr.f32.mxu0 %v139
    %350 = vmatmul.mubr.f32.gmra.mrb[0].mxu0 %v52
    %v351 = vpop.f32.mrb[0].mxu0
    %v352 = vadd.f32 %v282, %v351
    %v353 = vpop.f32.mrb[0].mxu0
    %354 = vdwg.mxu0
    %v355 = vld [vmem:[%s2] sm:$0xff]
    %v356 = vld [vmem:[%s2 + $0x8] sm:$0xff]
    %v357 = vld [vmem:[%s2 + $0x10] sm:$0xff]
    %v358 = vld [vmem:[%s2 + $0x18] sm:$0xff]
    %v359 = vld [vmem:[%s2 + $0x20] sm:$0xff]
    %v360 = vld [vmem:[%s2 + $0x28] sm:$0xff]
    %v361 = vld [vmem:[%s2 + $0x30] sm:$0xff]
    %v362 = vld [vmem:[%s2 + $0x38] sm:$0xff]
    %v363 = vld [vmem:[%s2 + $0x40] sm:$0xff]
    %v364 = vld [vmem:[%s2 + $0x48] sm:$0xff]
    %v365 = vld [vmem:[%s2 + $0x50] sm:$0xff]
    %v366 = vld [vmem:[%s2 + $0x58] sm:$0xff]
    %v367 = vld [vmem:[%s2 + $0x60] sm:$0xff]
    %v368 = vld [vmem:[%s2 + $0x68] sm:$0xff]
    %v369 = vld [vmem:[%s2 + $0x70] sm:$0xff]
    %v370 = vld [vmem:[%s2 + $0x78] sm:$0xff]
    %v371 = vld [vmem:[%s2 + $0x80] sm:$0xff]
    %v372 = vld [vmem:[%s2 + $0x88] sm:$0xff]
    %v373 = vld [vmem:[%s2 + $0x90] sm:$0xff]
    %v374 = vld [vmem:[%s2 + $0x98] sm:$0xff]
    %v375 = vld [vmem:[%s2 + $0xa0] sm:$0xff]
    %v376 = vld [vmem:[%s2 + $0xa8] sm:$0xff]
    %v377 = vld [vmem:[%s2 + $0xb0] sm:$0xff]
    %v378 = vld [vmem:[%s2 + $0xb8] sm:$0xff]
    %v379 = vld [vmem:[%s2 + $0xc0] sm:$0xff]
    %v380 = vld [vmem:[%s2 + $0xc8] sm:$0xff]
    %v381 = vld [vmem:[%s2 + $0xd0] sm:$0xff]
    %v382 = vld [vmem:[%s2 + $0xd8] sm:$0xff]
    %v383 = vld [vmem:[%s2 + $0xe0] sm:$0xff]
    %v384 = vld [vmem:[%s2 + $0xe8] sm:$0xff]
    %v385 = vld [vmem:[%s2 + $0xf0] sm:$0xff]
    %v386 = vld [vmem:[%s2 + $0xf8] sm:$0xff]
    %v387 = vld [vmem:[%s2 + $0x100] sm:$0xff]
    %v388 = vld [vmem:[%s2 + $0x108] sm:$0xff]
    %v389 = vld [vmem:[%s2 + $0x110] sm:$0xff]
    %v390 = vld [vmem:[%s2 + $0x118] sm:$0xff]
    %v391 = vld [vmem:[%s2 + $0x120] sm:$0xff]
    %v392 = vld [vmem:[%s2 + $0x128] sm:$0xff]
    %v393 = vld [vmem:[%s2 + $0x130] sm:$0xff]
    %v394 = vld [vmem:[%s2 + $0x138] sm:$0xff]
    %v395 = vld [vmem:[%s2 + $0x140] sm:$0xff]
    %v396 = vld [vmem:[%s2 + $0x148] sm:$0xff]
    %v397 = vld [vmem:[%s2 + $0x150] sm:$0xff]
    %v398 = vld [vmem:[%s2 + $0x158] sm:$0xff]
    %v399 = vld [vmem:[%s2 + $0x160] sm:$0xff]
    %v400 = vld [vmem:[%s2 + $0x168] sm:$0xff]
    %v401 = vld [vmem:[%s2 + $0x170] sm:$0xff]
    %v402 = vld [vmem:[%s2 + $0x178] sm:$0xff]
    %v403 = vld [vmem:[%s2 + $0x180] sm:$0xff]
    %v404 = vld [vmem:[%s2 + $0x188] sm:$0xff]
    %v405 = vld [vmem:[%s2 + $0x190] sm:$0xff]
    %v406 = vld [vmem:[%s2 + $0x198] sm:$0xff]
    %v407 = vld [vmem:[%s2 + $0x1a0] sm:$0xff]
    %v408 = vld [vmem:[%s2 + $0x1a8] sm:$0xff]
    %v409 = vld [vmem:[%s2 + $0x1b0] sm:$0xff]
    %v410 = vld [vmem:[%s2 + $0x1b8] sm:$0xff]
    %v411 = vld [vmem:[%s2 + $0x1c0] sm:$0xff]
    %v412 = vld [vmem:[%s2 + $0x1c8] sm:$0xff]
    %v413 = vld [vmem:[%s2 + $0x1d0] sm:$0xff]
    %v414 = vld [vmem:[%s2 + $0x1d8] sm:$0xff]
    %v415 = vld [vmem:[%s2 + $0x1e0] sm:$0xff]
    %v416 = vld [vmem:[%s2 + $0x1e8] sm:$0xff]
    %v417 = vld [vmem:[%s2 + $0x1f0] sm:$0xff]
    %v418 = vld [vmem:[%s2 + $0x1f8] sm:$0xff]
    %v419 = vld [vmem:[%s2 + $0x200] sm:$0xff]
    %v420 = vld [vmem:[%s2 + $0x208] sm:$0xff]
    %v421 = vld [vmem:[%s2 + $0x210] sm:$0xff]
    %v422 = vld [vmem:[%s2 + $0x218] sm:$0xff]
    %v423 = vld [vmem:[%s2 + $0x220] sm:$0xff]
    %v424 = vld [vmem:[%s2 + $0x228] sm:$0xff]
    %v425 = vld [vmem:[%s2 + $0x230] sm:$0xff]
    %v426 = vld [vmem:[%s2 + $0x238] sm:$0xff]
    %v427 = vld [vmem:[%s2 + $0x240] sm:$0xff]
    %v428 = vld [vmem:[%s2 + $0x248] sm:$0xff]
    %v429 = vld [vmem:[%s2 + $0x250] sm:$0xff]
    %v430 = vld [vmem:[%s2 + $0x258] sm:$0xff]
    %v431 = vld [vmem:[%s2 + $0x260] sm:$0xff]
    %v432 = vld [vmem:[%s2 + $0x268] sm:$0xff]
    %v433 = vld [vmem:[%s2 + $0x270] sm:$0xff]
    %v434 = vld [vmem:[%s2 + $0x278] sm:$0xff]
    %v435 = vld [vmem:[%s2 + $0x280] sm:$0xff]
    %v436 = vld [vmem:[%s2 + $0x288] sm:$0xff]
    %v437 = vld [vmem:[%s2 + $0x290] sm:$0xf]
    %v439 = vsel %vm141, %v437, 0
    %441 = vmatprep.subr.mxu0 0.0
    %442 = vmatpush1.msra.mxu0 %v355
    %443 = vmatprep.subr.mxu0 0.0
    %444 = vmatpush1.msra.mxu0 %v356
    %445 = vmatprep.subr.mxu0 0.0
    %446 = vmatpush1.msra.mxu0 %v357
    %447 = vmatprep.subr.mxu0 0.0
    %448 = vmatpush1.msra.mxu0 %v358
    %449 = vmatprep.subr.mxu0 0.0
    %450 = vmatpush1.msra.mxu0 %v359
    %451 = vmatprep.subr.mxu0 0.0
    %452 = vmatpush1.msra.mxu0 %v360
    %453 = vmatprep.subr.mxu0 0.0
    %454 = vmatpush1.msra.mxu0 %v361
    %455 = vmatprep.subr.mxu0 0.0
    %456 = vmatpush1.msra.mxu0 %v362
    %457 = vmatprep.subr.mxu0 0.0
    %458 = vmatpush1.msra.mxu0 %v363
    %459 = vmatprep.subr.mxu0 0.0
    %460 = vmatpush1.msra.mxu0 %v364
    %461 = vmatprep.subr.mxu0 0.0
    %462 = vmatpush1.msra.mxu0 %v365
    %463 = vmatprep.subr.mxu0 0.0
    %464 = vmatpush1.msra.mxu0 %v366
    %465 = vmatprep.subr.mxu0 0.0
    %466 = vmatpush1.msra.mxu0 %v367
    %467 = vmatprep.subr.mxu0 0.0
    %468 = vmatpush1.msra.mxu0 %v368
    %469 = vmatprep.subr.mxu0 0.0
    %470 = vmatpush1.msra.mxu0 %v369
    %471 = vmatprep.subr.mxu0 0.0
    %472 = vmatpush1.msra.mxu0 %v370
    %473 = vmatprep.subr.mxu0 0.0
    %474 = vmatpush1.msra.mxu0 %v371
    %475 = vmatprep.subr.mxu0 0.0
    %476 = vmatpush1.msra.mxu0 %v372
    %477 = vmatprep.subr.mxu0 0.0
    %478 = vmatpush1.msra.mxu0 %v373
    %479 = vmatprep.subr.mxu0 0.0
    %480 = vmatpush1.msra.mxu0 %v374
    %481 = vmatprep.subr.mxu0 0.0
    %482 = vmatpush1.msra.mxu0 %v375
    %483 = vmatprep.subr.mxu0 0.0
    %484 = vmatpush1.msra.mxu0 %v376
    %485 = vmatprep.subr.mxu0 0.0
    %486 = vmatpush1.msra.mxu0 %v377
    %487 = vmatprep.subr.mxu0 0.0
    %488 = vmatpush1.msra.mxu0 %v378
    %489 = vmatprep.subr.mxu0 0.0
    %490 = vmatpush1.msra.mxu0 %v379
    %491 = vmatprep.subr.mxu0 0.0
    %492 = vmatpush1.msra.mxu0 %v380
    %493 = vmatprep.subr.mxu0 0.0
    %494 = vmatpush1.msra.mxu0 %v381
    %495 = vmatprep.subr.mxu0 0.0
    %496 = vmatpush1.msra.mxu0 %v382
    %497 = vmatprep.subr.mxu0 0.0
    %498 = vmatpush1.msra.mxu0 %v383
    %499 = vmatprep.subr.mxu0 0.0
    %500 = vmatpush1.msra.mxu0 %v384
    %501 = vmatprep.subr.mxu0 0.0
    %502 = vmatpush1.msra.mxu0 %v385
    %503 = vmatprep.subr.mxu0 0.0
    %504 = vmatpush1.msra.mxu0 %v386
    %505 = vmatprep.mubr.f32.mxu0 %v49
    %506 = vmatmul.mubr.f32.gmra.mrb[0].mxu0 %v48
    %v507 = vpop.f32.mrb[0].mxu0
    %v508 = vadd.f32 0.0, %v507
    %v509 = vpop.f32.mrb[0].mxu0
    %510 = vdwg.mxu0
    %511 = vmatprep.subr.mxu0 0.0
    %512 = vmatpush1.msra.mxu0 %v387
    %513 = vmatprep.subr.mxu0 0.0
    %514 = vmatpush1.msra.mxu0 %v388
    %515 = vmatprep.subr.mxu0 0.0
    %516 = vmatpush1.msra.mxu0 %v389
    %517 = vmatprep.subr.mxu0 0.0
    %518 = vmatpush1.msra.mxu0 %v390
    %519 = vmatprep.subr.mxu0 0.0
    %520 = vmatpush1.msra.mxu0 %v391
    %521 = vmatprep.subr.mxu0 0.0
    %522 = vmatpush1.msra.mxu0 %v392
    %523 = vmatprep.subr.mxu0 0.0
    %524 = vmatpush1.msra.mxu0 %v393
    %525 = vmatprep.subr.mxu0 0.0
    %526 = vmatpush1.msra.mxu0 %v394
    %527 = vmatprep.subr.mxu0 0.0
    %528 = vmatpush1.msra.mxu0 %v395
    %529 = vmatprep.subr.mxu0 0.0
    %530 = vmatpush1.msra.mxu0 %v396
    %531 = vmatprep.subr.mxu0 0.0
    %532 = vmatpush1.msra.mxu0 %v397
    %533 = vmatprep.subr.mxu0 0.0
    %534 = vmatpush1.msra.mxu0 %v398
    %535 = vmatprep.subr.mxu0 0.0
    %536 = vmatpush1.msra.mxu0 %v399
    %537 = vmatprep.subr.mxu0 0.0
    %538 = vmatpush1.msra.mxu0 %v400
    %539 = vmatprep.subr.mxu0 0.0
    %540 = vmatpush1.msra.mxu0 %v401
    %541 = vmatprep.subr.mxu0 0.0
    %542 = vmatpush1.msra.mxu0 %v402
    %543 = vmatprep.subr.mxu0 0.0
    %544 = vmatpush1.msra.mxu0 %v403
    %545 = vmatprep.subr.mxu0 0.0
    %546 = vmatpush1.msra.mxu0 %v404
    %547 = vmatprep.subr.mxu0 0.0
    %548 = vmatpush1.msra.mxu0 %v405
    %549 = vmatprep.subr.mxu0 0.0
    %550 = vmatpush1.msra.mxu0 %v406
    %551 = vmatprep.subr.mxu0 0.0
    %552 = vmatpush1.msra.mxu0 %v407
    %553 = vmatprep.subr.mxu0 0.0
    %554 = vmatpush1.msra.mxu0 %v408
    %555 = vmatprep.subr.mxu0 0.0
    %556 = vmatpush1.msra.mxu0 %v409
    %557 = vmatprep.subr.mxu0 0.0
    %558 = vmatpush1.msra.mxu0 %v410
    %559 = vmatprep.subr.mxu0 0.0
    %560 = vmatpush1.msra.mxu0 %v411
    %561 = vmatprep.subr.mxu0 0.0
    %562 = vmatpush1.msra.mxu0 %v412
    %563 = vmatprep.subr.mxu0 0.0
    %564 = vmatpush1.msra.mxu0 %v413
    %565 = vmatprep.subr.mxu0 0.0
    %566 = vmatpush1.msra.mxu0 %v414
    %567 = vmatprep.subr.mxu0 0.0
    %568 = vmatpush1.msra.mxu0 %v415
    %569 = vmatprep.subr.mxu0 0.0
    %570 = vmatpush1.msra.mxu0 %v416
    %571 = vmatprep.subr.mxu0 0.0
    %572 = vmatpush1.msra.mxu0 %v417
    %573 = vmatprep.subr.mxu0 0.0
    %574 = vmatpush1.msra.mxu0 %v418
    %575 = vmatprep.mubr.f32.mxu0 %v51
    %576 = vmatmul.mubr.f32.gmra.mrb[0].mxu0 %v50
    %v577 = vpop.f32.mrb[0].mxu0
    %v578 = vadd.f32 %v508, %v577
    %v579 = vpop.f32.mrb[0].mxu0
    %580 = vdwg.mxu0
    %581 = vmatprep.subr.mxu0 0.0
    %582 = vmatpush1.msra.mxu0 %v419
    %583 = vmatprep.subr.mxu0 0.0
    %584 = vmatpush1.msra.mxu0 %v420
    %585 = vmatprep.subr.mxu0 0.0
    %586 = vmatpush1.msra.mxu0 %v421
    %587 = vmatprep.subr.mxu0 0.0
    %588 = vmatpush1.msra.mxu0 %v422
    %589 = vmatprep.subr.mxu0 0.0
    %590 = vmatpush1.msra.mxu0 %v423
    %591 = vmatprep.subr.mxu0 0.0
    %592 = vmatpush1.msra.mxu0 %v424
    %593 = vmatprep.subr.mxu0 0.0
    %594 = vmatpush1.msra.mxu0 %v425
    %595 = vmatprep.subr.mxu0 0.0
    %596 = vmatpush1.msra.mxu0 %v426
    %597 = vmatprep.subr.mxu0 0.0
    %598 = vmatpush1.msra.mxu0 %v427
    %599 = vmatprep.subr.mxu0 0.0
    %600 = vmatpush1.msra.mxu0 %v428
    %601 = vmatprep.subr.mxu0 0.0
    %602 = vmatpush1.msra.mxu0 %v429
    %603 = vmatprep.subr.mxu0 0.0
    %604 = vmatpush1.msra.mxu0 %v430
    %605 = vmatprep.subr.mxu0 0.0
    %606 = vmatpush1.msra.mxu0 %v431
    %607 = vmatprep.subr.mxu0 0.0
    %608 = vmatpush1.msra.mxu0 %v432
    %609 = vmatprep.subr.mxu0 0.0
    %610 = vmatpush1.msra.mxu0 %v433
    %611 = vmatprep.subr.mxu0 0.0
    %612 = vmatpush1.msra.mxu0 %v434
    %613 = vmatprep.subr.mxu0 0.0
    %614 = vmatpush1.msra.mxu0 %v435
    %615 = vmatprep.subr.mxu0 0.0
    %616 = vmatpush1.msra.mxu0 %v436
    %617 = vmatprep.subr.mxu0 0.0
    %618 = vmatpush1.msra.mxu0 %v439
    %619 = vmatprep.subr.mxu0 0.0
    %620 = vmatpush1.msra.mxu0 0.0
    %621 = vmatprep.subr.mxu0 0.0
    %622 = vmatpush1.msra.mxu0 0.0
    %623 = vmatprep.subr.mxu0 0.0
    %624 = vmatpush1.msra.mxu0 0.0
    %625 = vmatprep.subr.mxu0 0.0
    %626 = vmatpush1.msra.mxu0 0.0
    %627 = vmatprep.subr.mxu0 0.0
    %628 = vmatpush1.msra.mxu0 0.0
    %629 = vmatprep.subr.mxu0 0.0
    %630 = vmatpush1.msra.mxu0 0.0
    %631 = vmatprep.subr.mxu0 0.0
    %632 = vmatpush1.msra.mxu0 0.0
    %633 = vmatprep.subr.mxu0 0.0
    %634 = vmatpush1.msra.mxu0 0.0
    %635 = vmatprep.subr.mxu0 0.0
    %636 = vmatpush1.msra.mxu0 0.0
    %637 = vmatprep.subr.mxu0 0.0
    %638 = vmatpush1.msra.mxu0 0.0
    %639 = vmatprep.subr.mxu0 0.0
    %640 = vmatpush1.msra.mxu0 0.0
    %641 = vmatprep.subr.mxu0 0.0
    %642 = vmatpush1.msra.mxu0 0.0
    %643 = vmatprep.subr.mxu0 0.0
    %644 = vmatpush1.msra.mxu0 0.0
    %645 = vmatprep.mubr.f32.mxu0 %v139
    %646 = vmatmul.mubr.f32.gmra.mrb[0].mxu0 %v52
    %v647 = vpop.f32.mrb[0].mxu0
    %v648 = vadd.f32 %v578, %v647
    %v649 = vpop.f32.mrb[0].mxu0
    %650 = vdwg.mxu0
    %v651 = vmax.f32 %v352, %v648
    %v652 = vld [vmem:[%s3] sm:$0x1]
    %v654 = vlaneseq
    %v655 = vshrl.u32 %v654, 7
    %v656 = vsub.s32 0, %v655
    %v657 = vrot.slane %v652, %v656
    %v659 = vadd.f32 %v651, %v657
    %v660 = vmax.f32 %v659, 0.0
    %v661 = vld [vmem:[%s4] sm:$0xff]
    %v662 = vld [vmem:[%s4 + $0x8] sm:$0xff]
    %v663 = vld [vmem:[%s4 + $0x10] sm:$0xff]
    %v664 = vld [vmem:[%s4 + $0x18] sm:$0xff]
    %v665 = vld [vmem:[%s4 + $0x20] sm:$0xff]
    %v666 = vld [vmem:[%s4 + $0x28] sm:$0xff]
    %v667 = vld [vmem:[%s4 + $0x30] sm:$0xff]
    %v668 = vld [vmem:[%s4 + $0x38] sm:$0xff]
    %v669 = vld [vmem:[%s4 + $0x40] sm:$0xff]
    %v670 = vld [vmem:[%s4 + $0x48] sm:$0xff]
    %v671 = vld [vmem:[%s5] sm:$0x1]
    %v673 = vlaneseq
    %v674 = vshrl.u32 %v673, 7
    %v675 = vsub.s32 0, %v674
    %v676 = vrot.slane %v671, %v675
    %vm678 = vcmask 654336
    %v680 = vsel %vm678, %v660, 0
    %682 = vmatprep.subr.mxu0 0.0
    %683 = vmatpush1.msra.mxu0 %v661
    %684 = vmatprep.subr.mxu0 0.0
    %685 = vmatpush1.msra.mxu0 %v662
    %686 = vmatprep.subr.mxu0 0.0
    %687 = vmatpush1.msra.mxu0 %v663
    %688 = vmatprep.subr.mxu0 0.0
    %689 = vmatpush1.msra.mxu0 %v664
    %690 = vmatprep.subr.mxu0 0.0
    %691 = vmatpush1.msra.mxu0 %v665
    %692 = vmatprep.subr.mxu0 0.0
    %693 = vmatpush1.msra.mxu0 %v666
    %694 = vmatprep.subr.mxu0 0.0
    %695 = vmatpush1.msra.mxu0 %v667
    %696 = vmatprep.subr.mxu0 0.0
    %697 = vmatpush1.msra.mxu0 %v668
    %698 = vmatprep.subr.mxu0 0.0
    %699 = vmatpush1.msra.mxu0 %v669
    %700 = vmatprep.subr.mxu0 0.0
    %701 = vmatpush1.msra.mxu0 %v670
    %702 = vmatprep.subr.mxu0 0.0
    %703 = vmatpush1.msra.mxu0 0.0
    %704 = vmatprep.subr.mxu0 0.0
    %705 = vmatpush1.msra.mxu0 0.0
    %706 = vmatprep.subr.mxu0 0.0
    %707 = vmatpush1.msra.mxu0 0.0
    %708 = vmatprep.subr.mxu0 0.0
    %709 = vmatpush1.msra.mxu0 0.0
    %710 = vmatprep.subr.mxu0 0.0
    %711 = vmatpush1.msra.mxu0 0.0
    %712 = vmatprep.subr.mxu0 0.0
    %713 = vmatpush1.msra.mxu0 0.0
    %714 = vmatprep.subr.mxu0 0.0
    %715 = vmatpush1.msra.mxu0 0.0
    %716 = vmatprep.subr.mxu0 0.0
    %717 = vmatpush1.msra.mxu0 0.0
    %718 = vmatprep.subr.mxu0 0.0
    %719 = vmatpush1.msra.mxu0 0.0
    %720 = vmatprep.subr.mxu0 0.0
    %721 = vmatpush1.msra.mxu0 0.0
    %722 = vmatprep.subr.mxu0 0.0
    %723 = vmatpush1.msra.mxu0 0.0
    %724 = vmatprep.subr.mxu0 0.0
    %725 = vmatpush1.msra.mxu0 0.0
    %726 = vmatprep.subr.mxu0 0.0
    %727 = vmatpush1.msra.mxu0 0.0
    %728 = vmatprep.subr.mxu0 0.0
    %729 = vmatpush1.msra.mxu0 0.0
    %730 = vmatprep.subr.mxu0 0.0
    %731 = vmatpush1.msra.mxu0 0.0
    %732 = vmatprep.subr.mxu0 0.0
    %733 = vmatpush1.msra.mxu0 0.0
    %734 = vmatprep.subr.mxu0 0.0
    %735 = vmatpush1.msra.mxu0 0.0
    %736 = vmatprep.subr.mxu0 0.0
    %737 = vmatpush1.msra.mxu0 0.0
    %738 = vmatprep.subr.mxu0 0.0
    %739 = vmatpush1.msra.mxu0 0.0
    %740 = vmatprep.subr.mxu0 0.0
    %741 = vmatpush1.msra.mxu0 0.0
    %742 = vmatprep.subr.mxu0 0.0
    %743 = vmatpush1.msra.mxu0 0.0
    %744 = vmatprep.subr.mxu0 0.0
    %745 = vmatpush1.msra.mxu0 0.0
    %746 = vmatprep.mubr.f32.mxu0 0.0
    %747 = vmatmul.mubr.f32.gmra.mrb[0].mxu0 %v680
    %v748 = vpop.f32.mrb[0].mxu0
    %v749 = vadd.f32 %v676, %v748
    %v750 = vpop.f32.mrb[0].mxu0
    %751 = vdwg.mxu0
    %v752 = vmax.f32 %v749, 0.0
    %v753 = vld [vmem:[%s6] sm:$0xff]
    %v754 = vld [vmem:[%s6 + $0x8] sm:$0xff]
    %v755 = vld [vmem:[%s6 + $0x10] sm:$0xff]
    %v756 = vld [vmem:[%s6 + $0x18] sm:$0xff]
    %v757 = vld [vmem:[%s6 + $0x20] sm:$0xff]
    %v758 = vld [vmem:[%s6 + $0x28] sm:$0xff]
    %v759 = vld [vmem:[%s6 + $0x30] sm:$0xff]
    %v760 = vld [vmem:[%s6 + $0x38] sm:$0xff]
    %v761 = vld [vmem:[%s6 + $0x40] sm:$0xff]
    %v762 = vld [vmem:[%s6 + $0x48] sm:$0xff]
    %v763 = vld [vmem:[%s7] sm:$0x1]
    %v765 = vlaneseq
    %v766 = vshrl.u32 %v765, 7
    %v767 = vsub.s32 0, %v766
    %v768 = vrot.slane %v763, %v767
    %v771 = vsel %vm678, %v752, 0
    %773 = vmatprep.subr.mxu0 0.0
    %774 = vmatpush1.msra.mxu0 %v753
    %775 = vmatprep.subr.mxu0 0.0
    %776 = vmatpush1.msra.mxu0 %v754
    %777 = vmatprep.subr.mxu0 0.0
    %778 = vmatpush1.msra.mxu0 %v755
    %779 = vmatprep.subr.mxu0 0.0
    %780 = vmatpush1.msra.mxu0 %v756
    %781 = vmatprep.subr.mxu0 0.0
    %782 = vmatpush1.msra.mxu0 %v757
    %783 = vmatprep.subr.mxu0 0.0
    %784 = vmatpush1.msra.mxu0 %v758
    %785 = vmatprep.subr.mxu0 0.0
    %786 = vmatpush1.msra.mxu0 %v759
    %787 = vmatprep.subr.mxu0 0.0
    %788 = vmatpush1.msra.mxu0 %v760
    %789 = vmatprep.subr.mxu0 0.0
    %790 = vmatpush1.msra.mxu0 %v761
    %791 = vmatprep.subr.mxu0 0.0
    %792 = vmatpush1.msra.mxu0 %v762
    %793 = vmatprep.subr.mxu0 0.0
    %794 = vmatpush1.msra.mxu0 0.0
    %795 = vmatprep.subr.mxu0 0.0
    %796 = vmatpush1.msra.mxu0 0.0
    %797 = vmatprep.subr.mxu0 0.0
    %798 = vmatpush1.msra.mxu0 0.0
    %799 = vmatprep.subr.mxu0 0.0
    %800 = vmatpush1.msra.mxu0 0.0
    %801 = vmatprep.subr.mxu0 0.0
    %802 = vmatpush1.msra.mxu0 0.0
    %803 = vmatprep.subr.mxu0 0.0
    %804 = vmatpush1.msra.mxu0 0.0
    %805 = vmatprep.subr.mxu0 0.0
    %806 = vmatpush1.msra.mxu0 0.0
    %807 = vmatprep.subr.mxu0 0.0
    %808 = vmatpush1.msra.mxu0 0.0
    %809 = vmatprep.subr.mxu0 0.0
    %810 = vmatpush1.msra.mxu0 0.0
    %811 = vmatprep.subr.mxu0 0.0
    %812 = vmatpush1.msra.mxu0 0.0
    %813 = vmatprep.subr.mxu0 0.0
    %814 = vmatpush1.msra.mxu0 0.0
    %815 = vmatprep.subr.mxu0 0.0
    %816 = vmatpush1.msra.mxu0 0.0
    %817 = vmatprep.subr.mxu0 0.0
    %818 = vmatpush1.msra.mxu0 0.0
    %819 = vmatprep.subr.mxu0 0.0
    %820 = vmatpush1.msra.mxu0 0.0
    %821 = vmatprep.subr.mxu0 0.0
    %822 = vmatpush1.msra.mxu0 0.0
    %823 = vmatprep.subr.mxu0 0.0
    %824 = vmatpush1.msra.mxu0 0.0
    %825 = vmatprep.subr.mxu0 0.0
    %826 = vmatpush1.msra.mxu0 0.0
    %827 = vmatprep.subr.mxu0 0.0
    %828 = vmatpush1.msra.mxu0 0.0
    %829 = vmatprep.subr.mxu0 0.0
    %830 = vmatpush1.msra.mxu0 0.0
    %831 = vmatprep.subr.mxu0 0.0
    %832 = vmatpush1.msra.mxu0 0.0
    %833 = vmatprep.subr.mxu0 0.0
    %834 = vmatpush1.msra.mxu0 0.0
    %835 = vmatprep.subr.mxu0 0.0
    %836 = vmatpush1.msra.mxu0 0.0
    %837 = vmatprep.mubr.f32.mxu0 0.0
    %838 = vmatmul.mubr.f32.gmra.mrb[0].mxu0 %v771
    %v839 = vpop.f32.mrb[0].mxu0
    %v840 = vadd.f32 %v768, %v839
    %v841 = vpop.f32.mrb[0].mxu0
    %842 = vdwg.mxu0
    %v843 = vmax.f32 %v840, 0.0
    %v844 = vld [vmem:[%s8] sm:$0xff]
    %v845 = vld [vmem:[%s8 + $0x8] sm:$0xff]
    %v846 = vld [vmem:[%s8 + $0x10] sm:$0xff]
    %v847 = vld [vmem:[%s8 + $0x18] sm:$0xff]
    %v848 = vld [vmem:[%s8 + $0x20] sm:$0xff]
    %v849 = vld [vmem:[%s8 + $0x28] sm:$0xff]
    %v850 = vld [vmem:[%s8 + $0x30] sm:$0xff]
    %v851 = vld [vmem:[%s8 + $0x38] sm:$0xff]
    %v852 = vld [vmem:[%s8 + $0x40] sm:$0xff]
    %v853 = vld [vmem:[%s8 + $0x48] sm:$0xff]
    %v854 = vld [vmem:[%s9] sm:$0x1]
    %v856 = vlaneseq
    %v857 = vshrl.u32 %v856, 7
    %v858 = vsub.s32 0, %v857
    %v859 = vrot.slane %v854, %v858
    %v862 = vsel %vm678, %v843, 0
    %864 = vmatprep.subr.mxu0 0.0
    %865 = vmatpush1.msra.mxu0 %v844
    %866 = vmatprep.subr.mxu0 0.0
    %867 = vmatpush1.msra.mxu0 %v845
    %868 = vmatprep.subr.mxu0 0.0
    %869 = vmatpush1.msra.mxu0 %v846
    %870 = vmatprep.subr.mxu0 0.0
    %871 = vmatpush1.msra.mxu0 %v847
    %872 = vmatprep.subr.mxu0 0.0
    %873 = vmatpush1.msra.mxu0 %v848
    %874 = vmatprep.subr.mxu0 0.0
    %875 = vmatpush1.msra.mxu0 %v849
    %876 = vmatprep.subr.mxu0 0.0
    %877 = vmatpush1.msra.mxu0 %v850
    %878 = vmatprep.subr.mxu0 0.0
    %879 = vmatpush1.msra.mxu0 %v851
    %880 = vmatprep.subr.mxu0 0.0
    %881 = vmatpush1.msra.mxu0 %v852
    %882 = vmatprep.subr.mxu0 0.0
    %883 = vmatpush1.msra.mxu0 %v853
    %884 = vmatprep.subr.mxu0 0.0
    %885 = vmatpush1.msra.mxu0 0.0
    %886 = vmatprep.subr.mxu0 0.0
    %887 = vmatpush1.msra.mxu0 0.0
    %888 = vmatprep.subr.mxu0 0.0
    %889 = vmatpush1.msra.mxu0 0.0
    %890 = vmatprep.subr.mxu0 0.0
    %891 = vmatpush1.msra.mxu0 0.0
    %892 = vmatprep.subr.mxu0 0.0
    %893 = vmatpush1.msra.mxu0 0.0
    %894 = vmatprep.subr.mxu0 0.0
    %895 = vmatpush1.msra.mxu0 0.0
    %896 = vmatprep.subr.mxu0 0.0
    %897 = vmatpush1.msra.mxu0 0.0
    %898 = vmatprep.subr.mxu0 0.0
    %899 = vmatpush1.msra.mxu0 0.0
    %900 = vmatprep.subr.mxu0 0.0
    %901 = vmatpush1.msra.mxu0 0.0
    %902 = vmatprep.subr.mxu0 0.0
    %903 = vmatpush1.msra.mxu0 0.0
    %904 = vmatprep.subr.mxu0 0.0
    %905 = vmatpush1.msra.mxu0 0.0
    %906 = vmatprep.subr.mxu0 0.0
    %907 = vmatpush1.msra.mxu0 0.0
    %908 = vmatprep.subr.mxu0 0.0
    %909 = vmatpush1.msra.mxu0 0.0
    %910 = vmatprep.subr.mxu0 0.0
    %911 = vmatpush1.msra.mxu0 0.0
    %912 = vmatprep.subr.mxu0 0.0
    %913 = vmatpush1.msra.mxu0 0.0
    %914 = vmatprep.subr.mxu0 0.0
    %915 = vmatpush1.msra.mxu0 0.0
    %916 = vmatprep.subr.mxu0 0.0
    %917 = vmatpush1.msra.mxu0 0.0
    %918 = vmatprep.subr.mxu0 0.0
    %919 = vmatpush1.msra.mxu0 0.0
    %920 = vmatprep.subr.mxu0 0.0
    %921 = vmatpush1.msra.mxu0 0.0
    %922 = vmatprep.subr.mxu0 0.0
    %923 = vmatpush1.msra.mxu0 0.0
    %924 = vmatprep.subr.mxu0 0.0
    %925 = vmatpush1.msra.mxu0 0.0
    %926 = vmatprep.subr.mxu0 0.0
    %927 = vmatpush1.msra.mxu0 0.0
    %928 = vmatprep.mubr.f32.mxu0 0.0
    %929 = vmatmul.mubr.f32.gmra.mrb[0].mxu0 %v862
    %v930 = vpop.f32.mrb[0].mxu0
    %v931 = vadd.f32 %v859, %v930
    %v932 = vpop.f32.mrb[0].mxu0
    %933 = vdwg.mxu0
    %v934 = vmax.f32 %v931, 0.0
    %v935 = vld [vmem:[%s10] sm:$0xff]
    %v936 = vld [vmem:[%s10 + $0x8] sm:$0xff]
    %v937 = vld [vmem:[%s10 + $0x10] sm:$0xff]
    %v938 = vld [vmem:[%s10 + $0x18] sm:$0xff]
    %v939 = vld [vmem:[%s10 + $0x20] sm:$0xff]
    %v940 = vld [vmem:[%s10 + $0x28] sm:$0xff]
    %v941 = vld [vmem:[%s10 + $0x30] sm:$0xff]
    %v942 = vld [vmem:[%s10 + $0x38] sm:$0xff]
    %v943 = vld [vmem:[%s11] sm:$0x1]
    %v945 = vlaneseq
    %v946 = vshrl.u32 %v945, 7
    %v947 = vsub.s32 0, %v946
    %v948 = vrot.slane %v943, %v947
    %vm950 = vcmask 523264
    %v952 = vsel %vm950, %v934, 0
    %954 = vmatprep.subr.mxu0 0.0
    %955 = vmatpush1.msra.mxu0 %v935
    %956 = vmatprep.subr.mxu0 0.0
    %957 = vmatpush1.msra.mxu0 %v936
    %958 = vmatprep.subr.mxu0 0.0
    %959 = vmatpush1.msra.mxu0 %v937
    %960 = vmatprep.subr.mxu0 0.0
    %961 = vmatpush1.msra.mxu0 %v938
    %962 = vmatprep.subr.mxu0 0.0
    %963 = vmatpush1.msra.mxu0 %v939
    %964 = vmatprep.subr.mxu0 0.0
    %965 = vmatpush1.msra.mxu0 %v940
    %966 = vmatprep.subr.mxu0 0.0
    %967 = vmatpush1.msra.mxu0 %v941
    %968 = vmatprep.subr.mxu0 0.0
    %969 = vmatpush1.msra.mxu0 %v942
    %970 = vmatprep.subr.mxu0 0.0
    %971 = vmatpush1.msra.mxu0 0.0
    %972 = vmatprep.subr.mxu0 0.0
    %973 = vmatpush1.msra.mxu0 0.0
    %974 = vmatprep.subr.mxu0 0.0
    %975 = vmatpush1.msra.mxu0 0.0
    %976 = vmatprep.subr.mxu0 0.0
    %977 = vmatpush1.msra.mxu0 0.0
    %978 = vmatprep.subr.mxu0 0.0
    %979 = vmatpush1.msra.mxu0 0.0
    %980 = vmatprep.subr.mxu0 0.0
    %981 = vmatpush1.msra.mxu0 0.0
    %982 = vmatprep.subr.mxu0 0.0
    %983 = vmatpush1.msra.mxu0 0.0
    %984 = vmatprep.subr.mxu0 0.0
    %985 = vmatpush1.msra.mxu0 0.0
    %986 = vmatprep.subr.mxu0 0.0
    %987 = vmatpush1.msra.mxu0 0.0
    %988 = vmatprep.subr.mxu0 0.0
    %989 = vmatpush1.msra.mxu0 0.0
    %990 = vmatprep.subr.mxu0 0.0
    %991 = vmatpush1.msra.mxu0 0.0
    %992 = vmatprep.subr.mxu0 0.0
    %993 = vmatpush1.msra.mxu0 0.0
    %994 = vmatprep.subr.mxu0 0.0
    %995 = vmatpush1.msra.mxu0 0.0
    %996 = vmatprep.subr.mxu0 0.0
    %997 = vmatpush1.msra.mxu0 0.0
    %998 = vmatprep.subr.mxu0 0.0
    %999 = vmatpush1.msra.mxu0 0.0
    %1000 = vmatprep.subr.mxu0 0.0
    %1001 = vmatpush1.msra.mxu0 0.0
    %1002 = vmatprep.subr.mxu0 0.0
    %1003 = vmatpush1.msra.mxu0 0.0
    %1004 = vmatprep.subr.mxu0 0.0
    %1005 = vmatpush1.msra.mxu0 0.0
    %1006 = vmatprep.subr.mxu0 0.0
    %1007 = vmatpush1.msra.mxu0 0.0
    %1008 = vmatprep.subr.mxu0 0.0
    %1009 = vmatpush1.msra.mxu0 0.0
    %1010 = vmatprep.subr.mxu0 0.0
    %1011 = vmatpush1.msra.mxu0 0.0
    %1012 = vmatprep.subr.mxu0 0.0
    %1013 = vmatpush1.msra.mxu0 0.0
    %1014 = vmatprep.subr.mxu0 0.0
    %1015 = vmatpush1.msra.mxu0 0.0
    %1016 = vmatprep.subr.mxu0 0.0
    %1017 = vmatpush1.msra.mxu0 0.0
    %1018 = vmatprep.mubr.f32.mxu0 0.0
    %1019 = vmatmul.mubr.f32.gmra.mrb[0].mxu0 %v952
    %v1020 = vpop.f32.mrb[0].mxu0
    %v1021 = vadd.f32 %v948, %v1020
    %v1022 = vpop.f32.mrb[0].mxu0
    %1023 = vdwg.mxu0
    %v1024 = vmax.f32 %v1021, 0.0
    %v1025 = vld [vmem:[%s12] sm:$0xff]
    %v1026 = vld [vmem:[%s12 + $0x8] sm:$0xff]
    %v1027 = vld [vmem:[%s12 + $0x10] sm:$0xff]
    %v1028 = vld [vmem:[%s12 + $0x18] sm:$0xff]
    %v1029 = vld [vmem:[%s12 + $0x20] sm:$0xff]
    %v1030 = vld [vmem:[%s12 + $0x28] sm:$0xff]
    %v1031 = vld [vmem:[%s12 + $0x30] sm:$0xff]
    %v1032 = vld [vmem:[%s12 + $0x38] sm:$0xff]
    %v1033 = vld [vmem:[%s13] sm:$0x1]
    %v1035 = vlaneseq
    %v1036 = vshrl.u32 %v1035, 7
    %v1037 = vsub.s32 0, %v1036
    %v1038 = vrot.slane %v1033, %v1037
    %v1041 = vsel %vm950, %v1024, 0
    %1043 = vmatprep.subr.mxu0 0.0
    %1044 = vmatpush1.msra.mxu0 %v1025
    %1045 = vmatprep.subr.mxu0 0.0
    %1046 = vmatpush1.msra.mxu0 %v1026
    %1047 = vmatprep.subr.mxu0 0.0
    %1048 = vmatpush1.msra.mxu0 %v1027
    %1049 = vmatprep.subr.mxu0 0.0
    %1050 = vmatpush1.msra.mxu0 %v1028
    %1051 = vmatprep.subr.mxu0 0.0
    %1052 = vmatpush1.msra.mxu0 %v1029
    %1053 = vmatprep.subr.mxu0 0.0
    %1054 = vmatpush1.msra.mxu0 %v1030
    %1055 = vmatprep.subr.mxu0 0.0
    %1056 = vmatpush1.msra.mxu0 %v1031
    %1057 = vmatprep.subr.mxu0 0.0
    %1058 = vmatpush1.msra.mxu0 %v1032
    %1059 = vmatprep.subr.mxu0 0.0
    %1060 = vmatpush1.msra.mxu0 0.0
    %1061 = vmatprep.subr.mxu0 0.0
    %1062 = vmatpush1.msra.mxu0 0.0
    %1063 = vmatprep.subr.mxu0 0.0
    %1064 = vmatpush1.msra.mxu0 0.0
    %1065 = vmatprep.subr.mxu0 0.0
    %1066 = vmatpush1.msra.mxu0 0.0
    %1067 = vmatprep.subr.mxu0 0.0
    %1068 = vmatpush1.msra.mxu0 0.0
    %1069 = vmatprep.subr.mxu0 0.0
    %1070 = vmatpush1.msra.mxu0 0.0
    %1071 = vmatprep.subr.mxu0 0.0
    %1072 = vmatpush1.msra.mxu0 0.0
    %1073 = vmatprep.subr.mxu0 0.0
    %1074 = vmatpush1.msra.mxu0 0.0
    %1075 = vmatprep.subr.mxu0 0.0
    %1076 = vmatpush1.msra.mxu0 0.0
    %1077 = vmatprep.subr.mxu0 0.0
    %1078 = vmatpush1.msra.mxu0 0.0
    %1079 = vmatprep.subr.mxu0 0.0
    %1080 = vmatpush1.msra.mxu0 0.0
    %1081 = vmatprep.subr.mxu0 0.0
    %1082 = vmatpush1.msra.mxu0 0.0
    %1083 = vmatprep.subr.mxu0 0.0
    %1084 = vmatpush1.msra.mxu0 0.0
    %1085 = vmatprep.subr.mxu0 0.0
    %1086 = vmatpush1.msra.mxu0 0.0
    %1087 = vmatprep.subr.mxu0 0.0
    %1088 = vmatpush1.msra.mxu0 0.0
    %1089 = vmatprep.subr.mxu0 0.0
    %1090 = vmatpush1.msra.mxu0 0.0
    %1091 = vmatprep.subr.mxu0 0.0
    %1092 = vmatpush1.msra.mxu0 0.0
    %1093 = vmatprep.subr.mxu0 0.0
    %1094 = vmatpush1.msra.mxu0 0.0
    %1095 = vmatprep.subr.mxu0 0.0
    %1096 = vmatpush1.msra.mxu0 0.0
    %1097 = vmatprep.subr.mxu0 0.0
    %1098 = vmatpush1.msra.mxu0 0.0
    %1099 = vmatprep.subr.mxu0 0.0
    %1100 = vmatpush1.msra.mxu0 0.0
    %1101 = vmatprep.subr.mxu0 0.0
    %1102 = vmatpush1.msra.mxu0 0.0
    %1103 = vmatprep.subr.mxu0 0.0
    %1104 = vmatpush1.msra.mxu0 0.0
    %1105 = vmatprep.subr.mxu0 0.0
    %1106 = vmatpush1.msra.mxu0 0.0
    %1107 = vmatprep.mubr.f32.mxu0 0.0
    %1108 = vmatmul.mubr.f32.gmra.mrb[0].mxu0 %v1041
    %v1109 = vpop.f32.mrb[0].mxu0
    %v1110 = vadd.f32 %v1038, %v1109
    %v1111 = vpop.f32.mrb[0].mxu0
    %1112 = vdwg.mxu0
    %1113 = vst [vmem:[#allocation2] sm:$0xff] %v1110
    // Predicated region
    $region58: #{tpu_custom_call.1} parent=1 // pred_check
      _
    $region59: #{tpu_custom_call.1} parent=1 // pred_check_branch
      %1115 = sbr.rel (0) target = $region61
    $region60: #{tpu_custom_call.1} parent=1 // pred_region
      %s1117 = ssub.s32 128, 128
      %1118 = vsyncadd [#allocation3], %s1117
      %s1120 = sshll.u32 [#allocation2], 4
      %s1121 = int_to_ptr.vmem [resolvable:$true] %s1120
      %1123 = dma.vmem_to_hbm [thread:$0]  %s1121, 128, %s14, [#allocation3]
    $region61: #{tpu_custom_call.1} parent=1 // pred_fallthru
      _
    // Predicated region
    $region62: #{tpu_custom_call.1} parent=1 // pred_check
      _
    $region63: #{tpu_custom_call.1} parent=1 // pred_check_branch
      %1125 = sbr.rel (0) target = $region65
    $region64: #{tpu_custom_call.1} parent=1 // pred_region
      %1126 = dma.done [#allocation3], 128
    $region65: #{tpu_custom_call.1} parent=1 // pred_fallthru
      _
    %1127 = vsyncpa [#allocation3], 1

</llo_original>
